<compile_context>
chip_gen: v6e
topology: v6e:2x2x1
jax: 0.10.0
libtpu: 0.0.40
codegen_flags: <defaults>
</compile_context>

<pallas_src>
from functools import lru_cache
import math

import numpy as np
import jax
import jax.numpy as jnp
from jax.experimental import pallas as pl
from jax.experimental.pallas import tpu as pltpu


# ----------------------------------------------------------------------------
# Reference 1-D idct (norm=None) along the last axis (irfft-based), numpy.
# Used to build the transform matrices and as a correctness oracle.
# ----------------------------------------------------------------------------
def _np_idct(X):
    x_shape = X.shape
    N = x_shape[-1]
    X_v = X.reshape(-1, N).astype(np.float64) / 2.0
    k = np.arange(N, dtype=np.float64)[None, :] * np.pi / (2 * N)
    W_r = np.cos(k)
    W_i = np.sin(k)
    V_t_r = X_v
    V_t_i = np.concatenate([X_v[:, :1] * 0.0, -X_v[:, ::-1][:, :-1]], axis=1)
    V_r = V_t_r * W_r - V_t_i * W_i
    V_i = V_t_r * W_i + V_t_i * W_r
    Vc = V_r + 1j * V_i
    # _irfft with onesided=False: keep N//2+1 bins, irfft back to length N
    v = np.fft.irfft(Vc[:, : N // 2 + 1], n=N, axis=1)
    x = np.zeros_like(v)
    x[:, ::2] += v[:, : N - N // 2]
    x[:, 1::2] += v[:, ::-1][:, : N // 2]
    return x.reshape(x_shape)


def _np_idct3d_ref(x):
    x1 = _np_idct(x)
    x2 = _np_idct(np.swapaxes(x1, -1, -2))
    x3 = _np_idct(np.swapaxes(x2, -1, -3))
    return np.swapaxes(np.swapaxes(x3, -1, -3), -1, -2)


def _idct_matrix64(N):
    """M (N,N) float64 with idct(X) == X @ M along the last axis (norm=None)."""
    return _np_idct(np.eye(N, dtype=np.float64))


# Cached, device-resident transform matrices (built/uploaded once per shape).
@lru_cache(maxsize=None)
def _kron_full_matrix(C, H, W):
    K = np.kron(_idct_matrix64(C), np.kron(_idct_matrix64(H), _idct_matrix64(W)))
    return jnp.asarray(K.astype(np.float32))        # (CHW, CHW)


@lru_cache(maxsize=None)
def _kron_hw_matrix(H, W):
    K = np.kron(_idct_matrix64(H), _idct_matrix64(W))
    return jnp.asarray(K.astype(np.float32))         # (HW, HW)


@lru_cache(maxsize=None)
def _mc_block_matrix(C, TB):
    """Block-diagonal kron(I_TB, Mc^T): one plain 2-D matmul mixes channels of
    TB independent batch rows at once (rows never cross batch boundaries)."""
    McT = np.ascontiguousarray(_idct_matrix64(C).T)
    blk = np.kron(np.eye(TB, dtype=np.float64), McT)
    return jnp.asarray(blk.astype(np.float32))        # (TB*C, TB*C)


# ----------------------------------------------------------------------------
# Pallas kernels
# ----------------------------------------------------------------------------
def _idct3d_hw_kernel(x_ref, khw_ref, mcblk_ref, o_ref):
    # x_ref: (TBC, HW) ; khw_ref: (HW, TN) ; mcblk_ref: (TBC, TBC) ; o: (TBC, TN)
    t = jnp.dot(x_ref[...], khw_ref[...], preferred_element_type=jnp.float32)
    o_ref[...] = jnp.dot(
        mcblk_ref[...], t, preferred_element_type=jnp.float32
    ).astype(o_ref.dtype)


def _idct3d_kron_kernel(x_ref, k_ref, o_ref):
    # x_ref: (TB, CHW) ; k_ref: (CHW, TN) ; o_ref: (TB, TN)
    o_ref[...] = jnp.dot(
        x_ref[...], k_ref[...], preferred_element_type=jnp.float32
    ).astype(o_ref.dtype)


# ----------------------------------------------------------------------------
# Tiling heuristics
# ----------------------------------------------------------------------------
_MAX_HW = 2048            # Khw block <= 2048*1024*4B = 8 MiB
_MAX_FULL = 2048          # full Kron block <= 8 MiB
_TILE_BYTE_CAP = 4 << 20  # keep per-step x/out tiles modest (double-buffered)
_VMEM_LIMIT = 48 * 1024 * 1024


def _choose_tb(B, C, HW):
    """Batch rows per grid step. Guarantees the (TB*C, ...) blocks are either
    the full row extent or a multiple of 8 sublanes."""
    if B <= 8 and B * C * HW * 4 <= _TILE_BYTE_CAP:
        return B                                   # single row tile, always legal
    r = 8 // math.gcd(C, 8)                        # min TB with (TB*C) % 8 == 0
    cands = [t for t in range(r, 9, r) if t * C * HW * 4 <= _TILE_BYTE_CAP]
    if not cands:
        cands = [r]
    divs = [t for t in cands if B % t == 0]
    tb = max(divs) if divs else max(cands)
    return min(tb, B)


def _choose_tn(n):
    """Lane-dense column tile that divides n exactly."""
    if n > 1024 and n % 1024 == 0:
        return 1024
    if n >= 512 and n % 256 == 0:
        return n // 2
    return n


# ----------------------------------------------------------------------------
# Wrapper
# ----------------------------------------------------------------------------
def _idct3d_hw_path(x, B, C, H, W):
    HW = H * W
    TB = _choose_tb(B, C, HW)
    Bp = ((B + TB - 1) // TB) * TB
    TBC = TB * C
    TN = _choose_tn(HW)

    x2 = x.reshape(B * C, HW)
    if Bp != B:
        # Explicit zero-pad: zero rows are safe under the block-diag channel mix.
        x2 = jnp.pad(x2, ((0, (Bp - B) * C), (0, 0)))

    khw = _kron_hw_matrix(H, W)                    # (HW, HW)
    mcblk = _mc_block_matrix(C, TB)                # (TBC, TBC)

    grid = (Bp // TB, HW // TN)
    y = pl.pallas_call(
        _idct3d_hw_kernel,
        out_shape=jax.ShapeDtypeStruct((Bp * C, HW), jnp.float32),
        grid_spec=pltpu.PrefetchScalarGridSpec(
            num_scalar_prefetch=0,
            grid=grid,
            in_specs=[
                pl.BlockSpec((TBC, HW), lambda i, j: (i, 0)),
                pl.BlockSpec((HW, TN), lambda i, j: (0, j)),
                pl.BlockSpec((TBC, TBC), lambda i, j: (0, 0)),
            ],
            out_specs=pl.BlockSpec((TBC, TN), lambda i, j: (i, j)),
        ),
        compiler_params=pltpu.CompilerParams(
            dimension_semantics=("parallel", "parallel"),
            vmem_limit_bytes=_VMEM_LIMIT,
        ),
    )(x2, khw, mcblk)

    if Bp != B:
        y = y[: B * C]
    return y.reshape(B, C, H, W)


def _idct3d_full_kron_path(x, B, C, H, W):
    CHW = C * H * W
    kmat = _kron_full_matrix(C, H, W)              # (CHW, CHW)
    x2 = x.reshape(B, CHW)
    TB = B if B <= 256 else 256
    TN = _choose_tn(CHW)
    grid = (pl.cdiv(B, TB), CHW // TN)
    y = pl.pallas_call(
        _idct3d_kron_kernel,
        out_shape=jax.ShapeDtypeStruct((B, CHW), jnp.float32),
        grid_spec=pltpu.PrefetchScalarGridSpec(
            num_scalar_prefetch=0,
            grid=grid,
            in_specs=[
                pl.BlockSpec((TB, CHW), lambda i, j: (i, 0)),
                pl.BlockSpec((CHW, TN), lambda i, j: (0, j)),
            ],
            out_specs=pl.BlockSpec((TB, TN), lambda i, j: (i, j)),
        ),
        compiler_params=pltpu.CompilerParams(
            dimension_semantics=("parallel", "parallel"),
            vmem_limit_bytes=_VMEM_LIMIT,
        ),
    )(x2, kmat)
    return y.reshape(B, C, H, W)


def idct_3d_pallas(x):
    """forward() of the torch IDCT_2D module: separable unnormalized inverse
    DCT (DCT-III, norm=None) along W, then H, then C of an NCHW tensor."""
    B, C, H, W = x.shape
    x = x.astype(jnp.float32)
    HW = H * W
    CHW = C * HW

    if HW <= _MAX_HW and (HW >= 128 or CHW > _MAX_FULL):
        return _idct3d_hw_path(x, B, C, H, W)
    if CHW <= _MAX_FULL:
        return _idct3d_full_kron_path(x, B, C, H, W)
    # TODO(synk): very large H*W would need a K/N-tiled multi-pass separable path.
    raise NotImplementedError("idct_3d_pallas: H*W too large for the fused kernels")


if __name__ == "__main__":
    key = jax.random.PRNGKey(0)

    # Primary path: lane-dense HW (H*W = 256 >= 128).
    B, C, H, W = 2, 4, 16, 16
    x = jax.random.normal(key, (B, C, H, W), dtype=jnp.float32)
    out = jax.block_until_ready(idct_3d_pallas(x))
    ref = _np_idct3d_ref(np.asarray(x).astype(np.float64))
    assert out.shape == x.shape and out.dtype == jnp.float32
    np.testing.assert_allclose(np.asarray(out), ref, atol=1e-4, rtol=1e-4)

    # Full-Kron path: tiny HW (< 128) but lane-dense C*H*W.
    x2 = jax.random.normal(jax.random.PRNGKey(1), (2, 8, 8, 8), dtype=jnp.float32)
    out2 = jax.block_until_ready(idct_3d_pallas(x2))
    ref2 = _np_idct3d_ref(np.asarray(x2).astype(np.float64))
    np.testing.assert_allclose(np.asarray(out2), ref2, atol=1e-4, rtol=1e-4)

    print("KERNEL_OK")
</pallas_src>

<mosaic_0001>
module attributes {stable_mosaic.version = 11 : i64} {
  func.func @_idct3d_hw_kernel(%arg0: i32, %arg1: i32, %arg2: memref<8x256xf32, #tpu.memory_space<vmem>>, %arg3: memref<256x256xf32, #tpu.memory_space<vmem>>, %arg4: memref<8x8xf32, #tpu.memory_space<vmem>>, %arg5: memref<8x256xf32, #tpu.memory_space<vmem>>) attributes {dimension_semantics = [#tpu.dimension_semantics<parallel>, #tpu.dimension_semantics<parallel>], iteration_bounds = array<i64: 1, 1>, scalar_prefetch = 0 : i64, scratch_operands = 0 : i64, tpu.core_type = #tpu.core_type<tc>, window_params = [{transform_indices = @transform_0, window_bounds = array<i64: 8, 256>}, {transform_indices = @transform_1, window_bounds = array<i64: 256, 256>}, {pipeline_mode = #tpu.pipeline_mode<synchronous>, transform_indices = @transform_2, window_bounds = array<i64: 8, 8>}, {transform_indices = @transform_3, window_bounds = array<i64: 8, 256>}]} {
    %c0 = arith.constant 0 : index
    %c0_0 = arith.constant 0 : index
    %0 = vector.load %arg2[%c0, %c0_0] : memref<8x256xf32, #tpu.memory_space<vmem>>, vector<8x256xf32>
    %c0_1 = arith.constant 0 : index
    %c0_2 = arith.constant 0 : index
    %1 = vector.load %arg3[%c0_1, %c0_2] : memref<256x256xf32, #tpu.memory_space<vmem>>, vector<256x256xf32>
    %cst = arith.constant dense<0.000000e+00> : vector<8x256xf32>
    %2 = tpu.matmul %0, %1, %cst {dimension_numbers = #tpu.dot_dimension_numbers<[1], [0], [0], [1], [0, 0, 1, 1], [], []>} : vector<8x256xf32>, vector<256x256xf32>, vector<8x256xf32> -> vector<8x256xf32>
    %c0_3 = arith.constant 0 : index
    %c0_4 = arith.constant 0 : index
    %3 = vector.load %arg4[%c0_3, %c0_4] : memref<8x8xf32, #tpu.memory_space<vmem>>, vector<8x8xf32>
    %cst_5 = arith.constant dense<0.000000e+00> : vector<8x256xf32>
    %4 = tpu.matmul %3, %2, %cst_5 {dimension_numbers = #tpu.dot_dimension_numbers<[1], [0], [0], [1], [0, 0, 1, 1], [], []>} : vector<8x8xf32>, vector<8x256xf32>, vector<8x256xf32> -> vector<8x256xf32>
    %c0_6 = arith.constant 0 : index
    %c0_7 = arith.constant 0 : index
    %5 = vector.load %arg5[%c0_6, %c0_7] : memref<8x256xf32, #tpu.memory_space<vmem>>, vector<8x256xf32>
    tpu.vector_store %arg5[%c0_6, %c0_7], %4 {strides = array<i32>} : memref<8x256xf32, #tpu.memory_space<vmem>>, vector<8x256xf32>,
    return
  }
  func.func @transform_0(%arg0: i32, %arg1: i32) -> (i32, i32) {
    %c0_i32 = arith.constant 0 : i32
    %c0_i32_0 = arith.constant 0 : i32
    return %arg0, %c0_i32 : i32, i32
  }
  func.func @transform_1(%arg0: i32, %arg1: i32) -> (i32, i32) {
    %c0_i32 = arith.constant 0 : i32
    %c0_i32_0 = arith.constant 0 : i32
    return %c0_i32, %arg1 : i32, i32
  }
  func.func @transform_2(%arg0: i32, %arg1: i32) -> (i32, i32) {
    %c0_i32 = arith.constant 0 : i32
    %c0_i32_0 = arith.constant 0 : i32
    %c0_i32_1 = arith.constant 0 : i32
    return %c0_i32, %c0_i32_0 : i32, i32
  }
  func.func @transform_3(%arg0: i32, %arg1: i32) -> (i32, i32) {
    %c0_i32 = arith.constant 0 : i32
    return %arg0, %arg1 : i32, i32
  }
}

</mosaic_0001>

<llo_original>
// kernel: tpu_custom_call.1
$region0: #{tpu_custom_call.1}
  #allocation0 [shape = 'u32[]', space=smem, size = 0x4, offset = 0x4, fixed_abs, tag = 'smem constant byte address 0x4 - core index']
  #allocation1 [shape = 'u32[144,128]{1,0:T(1,128)}', space=vmem, size = 0x12000, scoped, tag = 'internal scratch']
  %s0 = inlined_call_operand.hbm [shape: f32[8,256], index: 0, kind: input, shape index: {}]
  %s1 = inlined_call_operand.hbm [shape: f32[256,256], index: 1, kind: input, shape index: {}]
  %s2 = inlined_call_operand.hbm [shape: f32[8,8], index: 2, kind: input, shape index: {}]
  %s3 = inlined_call_operand.hbm [shape: f32[8,256], index: 3, kind: output, shape index: {}]
  %s4 = sld [smem:[#allocation0]]
  $region34: #{tpu_custom_call.1} parent=0
    _
  %s6 = ssub.s32 1, %s4
  %s7 = scalar_select 0, %s6, %s4
  $region1: #{tpu_custom_call.1} parent=0
    #allocation2 [shape = 'u8[8192]{0}', space=vmem, size = 0x2000, scoped, tag = 'input window, operand 0, single buffered']
    #allocation3 [shape = 's32[1]{0}', space=sflag, size = 0x4, scoped, tag = 'scoped memory for tpu_custom_call.1']
    #allocation4 [shape = 's32[1]{0}', space=sflag, size = 0x4, scoped, tag = 'scoped memory for tpu_custom_call.1']
    #allocation5 [shape = 'u8[262144]{0}', space=vmem, size = 0x40000, scoped, tag = 'input window, operand 1, single buffered']
    #allocation6 [shape = 's32[1]{0}', space=sflag, size = 0x4, scoped, tag = 'scoped memory for tpu_custom_call.1']
    #allocation7 [shape = 'u8[4096]{0}', space=vmem, size = 0x1000, scoped, tag = 'input window, operand 2, single buffered']
    #allocation8 [shape = 'u8[8192]{0}', space=vmem, size = 0x2000, scoped, tag = 'output window, operand 0, single buffered']
    %8 = vsyncpa [#allocation3], 0
    %9 = vsyncpa [#allocation6], 0
    %10 = vsyncpa [#allocation4], 0
    // Predicated region
    $region2: #{tpu_custom_call.1} parent=1 // pred_check
      _
    $region3: #{tpu_custom_call.1} parent=1 // pred_check_branch
      %12 = sbr.rel (0) target = $region5
    $region4: #{tpu_custom_call.1} parent=1 // pred_region
      %s14 = ssub.s32 256, 256
      %15 = vsyncadd [#allocation3], %s14
      %s17 = sshll.u32 [#allocation2], 4
      %s18 = int_to_ptr.vmem [resolvable:$true] %s17
      %20 = dma.hbm_to_vmem [thread:$0]  %s0, 256, %s18, [#allocation3]
    $region5: #{tpu_custom_call.1} parent=1 // pred_fallthru
      _
    // Predicated region
    $region6: #{tpu_custom_call.1} parent=1 // pred_check
      _
    $region7: #{tpu_custom_call.1} parent=1 // pred_check_branch
      %22 = sbr.rel (0) target = $region9
    $region8: #{tpu_custom_call.1} parent=1 // pred_region
      %s24 = ssub.s32 8192, 8192
      %25 = vsyncadd [#allocation6], %s24
      %s26 = sshll.u32 [#allocation5], 4
      %s27 = int_to_ptr.vmem [resolvable:$true] %s26
      %32 = dma.hbm_to_vmem [thread:$0]  %s1, 8192, %s27, [#allocation6], 256, 256, 16
    $region9: #{tpu_custom_call.1} parent=1 // pred_fallthru
      _
    // Predicated region
    $region10: #{tpu_custom_call.1} parent=1 // pred_check
      _
    $region11: #{tpu_custom_call.1} parent=1 // pred_check_branch
      %34 = sbr.rel (0) target = $region13
    $region12: #{tpu_custom_call.1} parent=1 // pred_region
      %s36 = ssub.s32 128, 128
      %37 = vsyncadd [#allocation6], %s36
      %s39 = sshll.u32 [#allocation7], 4
      %s40 = int_to_ptr.vmem [resolvable:$true] %s39
      %42 = dma.hbm_to_vmem [thread:$0]  %s2, 128, %s40, [#allocation6]
    $region13: #{tpu_custom_call.1} parent=1 // pred_fallthru
      _
    // Predicated region
    $region14: #{tpu_custom_call.1} parent=1 // pred_check
      _
    $region15: #{tpu_custom_call.1} parent=1 // pred_check_branch
      %44 = sbr.rel (0) target = $region17
    $region16: #{tpu_custom_call.1} parent=1 // pred_region
      %45 = dma.done [#allocation3], 256
    $region17: #{tpu_custom_call.1} parent=1 // pred_fallthru
      _
    // Predicated region
    $region18: #{tpu_custom_call.1} parent=1 // pred_check
      _
    $region19: #{tpu_custom_call.1} parent=1 // pred_check_branch
      %47 = sbr.rel (0) target = $region21
    $region20: #{tpu_custom_call.1} parent=1 // pred_region
      %48 = dma.done [#allocation6], 8192
    $region21: #{tpu_custom_call.1} parent=1 // pred_fallthru
      _
    // Predicated region
    $region22: #{tpu_custom_call.1} parent=1 // pred_check
      _
    $region23: #{tpu_custom_call.1} parent=1 // pred_check_branch
      %50 = sbr.rel (0) target = $region25
    $region24: #{tpu_custom_call.1} parent=1 // pred_region
      %51 = dma.done [#allocation6], 128
    $region25: #{tpu_custom_call.1} parent=1 // pred_fallthru
      _
    %v52 = vld [vmem:[#allocation2] sm:$0xff]
    %v53 = vld [vmem:[#allocation2 + $0x8] sm:$0xff]
    %v54 = vld [vmem:[#allocation5] sm:$0xff]
    %v55 = vld [vmem:[#allocation5 + $0x8] sm:$0xff]
    %v56 = vld [vmem:[#allocation5 + $0x10] sm:$0xff]
    %v57 = vld [vmem:[#allocation5 + $0x18] sm:$0xff]
    %v58 = vld [vmem:[#allocation5 + $0x20] sm:$0xff]
    %v59 = vld [vmem:[#allocation5 + $0x28] sm:$0xff]
    %v60 = vld [vmem:[#allocation5 + $0x30] sm:$0xff]
    %v61 = vld [vmem:[#allocation5 + $0x38] sm:$0xff]
    %v62 = vld [vmem:[#allocation5 + $0x40] sm:$0xff]
    %v63 = vld [vmem:[#allocation5 + $0x48] sm:$0xff]
    %v64 = vld [vmem:[#allocation5 + $0x50] sm:$0xff]
    %v65 = vld [vmem:[#allocation5 + $0x58] sm:$0xff]
    %v66 = vld [vmem:[#allocation5 + $0x60] sm:$0xff]
    %v67 = vld [vmem:[#allocation5 + $0x68] sm:$0xff]
    %v68 = vld [vmem:[#allocation5 + $0x70] sm:$0xff]
    %v69 = vld [vmem:[#allocation5 + $0x78] sm:$0xff]
    %v70 = vld [vmem:[#allocation5 + $0x80] sm:$0xff]
    %v71 = vld [vmem:[#allocation5 + $0x88] sm:$0xff]
    %v72 = vld [vmem:[#allocation5 + $0x90] sm:$0xff]
    %v73 = vld [vmem:[#allocation5 + $0x98] sm:$0xff]
    %v74 = vld [vmem:[#allocation5 + $0xa0] sm:$0xff]
    %v75 = vld [vmem:[#allocation5 + $0xa8] sm:$0xff]
    %v76 = vld [vmem:[#allocation5 + $0xb0] sm:$0xff]
    %v77 = vld [vmem:[#allocation5 + $0xb8] sm:$0xff]
    %v78 = vld [vmem:[#allocation5 + $0xc0] sm:$0xff]
    %v79 = vld [vmem:[#allocation5 + $0xc8] sm:$0xff]
    %v80 = vld [vmem:[#allocation5 + $0xd0] sm:$0xff]
    %v81 = vld [vmem:[#allocation5 + $0xd8] sm:$0xff]
    %v82 = vld [vmem:[#allocation5 + $0xe0] sm:$0xff]
    %v83 = vld [vmem:[#allocation5 + $0xe8] sm:$0xff]
    %v84 = vld [vmem:[#allocation5 + $0xf0] sm:$0xff]
    %v85 = vld [vmem:[#allocation5 + $0xf8] sm:$0xff]
    %v86 = vld [vmem:[#allocation5 + $0x100] sm:$0xff]
    %v87 = vld [vmem:[#allocation5 + $0x108] sm:$0xff]
    %v88 = vld [vmem:[#allocation5 + $0x110] sm:$0xff]
    %v89 = vld [vmem:[#allocation5 + $0x118] sm:$0xff]
    %v90 = vld [vmem:[#allocation5 + $0x120] sm:$0xff]
    %v91 = vld [vmem:[#allocation5 + $0x128] sm:$0xff]
    %v92 = vld [vmem:[#allocation5 + $0x130] sm:$0xff]
    %v93 = vld [vmem:[#allocation5 + $0x138] sm:$0xff]
    %v94 = vld [vmem:[#allocation5 + $0x140] sm:$0xff]
    %v95 = vld [vmem:[#allocation5 + $0x148] sm:$0xff]
    %v96 = vld [vmem:[#allocation5 + $0x150] sm:$0xff]
    %v97 = vld [vmem:[#allocation5 + $0x158] sm:$0xff]
    %v98 = vld [vmem:[#allocation5 + $0x160] sm:$0xff]
    %v99 = vld [vmem:[#allocation5 + $0x168] sm:$0xff]
    %v100 = vld [vmem:[#allocation5 + $0x170] sm:$0xff]
    %v101 = vld [vmem:[#allocation5 + $0x178] sm:$0xff]
    %v102 = vld [vmem:[#allocation5 + $0x180] sm:$0xff]
    %v103 = vld [vmem:[#allocation5 + $0x188] sm:$0xff]
    %v104 = vld [vmem:[#allocation5 + $0x190] sm:$0xff]
    %v105 = vld [vmem:[#allocation5 + $0x198] sm:$0xff]
    %v106 = vld [vmem:[#allocation5 + $0x1a0] sm:$0xff]
    %v107 = vld [vmem:[#allocation5 + $0x1a8] sm:$0xff]
    %v108 = vld [vmem:[#allocation5 + $0x1b0] sm:$0xff]
    %v109 = vld [vmem:[#allocation5 + $0x1b8] sm:$0xff]
    %v110 = vld [vmem:[#allocation5 + $0x1c0] sm:$0xff]
    %v111 = vld [vmem:[#allocation5 + $0x1c8] sm:$0xff]
    %v112 = vld [vmem:[#allocation5 + $0x1d0] sm:$0xff]
    %v113 = vld [vmem:[#allocation5 + $0x1d8] sm:$0xff]
    %v114 = vld [vmem:[#allocation5 + $0x1e0] sm:$0xff]
    %v115 = vld [vmem:[#allocation5 + $0x1e8] sm:$0xff]
    %v116 = vld [vmem:[#allocation5 + $0x1f0] sm:$0xff]
    %v117 = vld [vmem:[#allocation5 + $0x1f8] sm:$0xff]
    %118 = vmatprep.subr.mxu0 %v85
    %119 = vmatpush1.msra.mxu0 %v84
    %120 = vmatprep.subr.mxu0 %v83
    %121 = vmatpush1.msra.mxu0 %v82
    %122 = vmatprep.subr.mxu0 %v81
    %123 = vmatpush1.msra.mxu0 %v80
    %124 = vmatprep.subr.mxu0 %v79
    %125 = vmatpush1.msra.mxu0 %v78
    %126 = vmatprep.subr.mxu0 %v77
    %127 = vmatpush1.msra.mxu0 %v76
    %128 = vmatprep.subr.mxu0 %v75
    %129 = vmatpush1.msra.mxu0 %v74
    %130 = vmatprep.subr.mxu0 %v73
    %131 = vmatpush1.msra.mxu0 %v72
    %132 = vmatprep.subr.mxu0 %v71
    %133 = vmatpush1.msra.mxu0 %v70
    %134 = vmatprep.subr.mxu0 %v69
    %135 = vmatpush1.msra.mxu0 %v68
    %136 = vmatprep.subr.mxu0 %v67
    %137 = vmatpush1.msra.mxu0 %v66
    %138 = vmatprep.subr.mxu0 %v65
    %139 = vmatpush1.msra.mxu0 %v64
    %140 = vmatprep.subr.mxu0 %v63
    %141 = vmatpush1.msra.mxu0 %v62
    %142 = vmatprep.subr.mxu0 %v61
    %143 = vmatpush1.msra.mxu0 %v60
    %144 = vmatprep.subr.mxu0 %v59
    %145 = vmatpush1.msra.mxu0 %v58
    %146 = vmatprep.subr.mxu0 %v57
    %147 = vmatpush1.msra.mxu0 %v56
    %148 = vmatprep.subr.mxu0 %v55
    %149 = vmatpush1.msra.mxu0 %v54
    %150 = vmatprep.subr.mxu0 %v117
    %151 = vmatpush2.msra.mxu0 %v116
    %152 = vmatprep.subr.mxu0 %v115
    %153 = vmatpush2.msra.mxu0 %v114
    %154 = vmatprep.subr.mxu0 %v113
    %155 = vmatpush2.msra.mxu0 %v112
    %156 = vmatprep.subr.mxu0 %v111
    %157 = vmatpush2.msra.mxu0 %v110
    %158 = vmatprep.subr.mxu0 %v109
    %159 = vmatpush2.msra.mxu0 %v108
    %160 = vmatprep.subr.mxu0 %v107
    %161 = vmatpush2.msra.mxu0 %v106
    %162 = vmatprep.subr.mxu0 %v105
    %163 = vmatpush2.msra.mxu0 %v104
    %164 = vmatprep.subr.mxu0 %v103
    %165 = vmatpush2.msra.mxu0 %v102
    %166 = vmatprep.subr.mxu0 %v101
    %167 = vmatpush2.msra.mxu0 %v100
    %168 = vmatprep.subr.mxu0 %v99
    %169 = vmatpush2.msra.mxu0 %v98
    %170 = vmatprep.subr.mxu0 %v97
    %171 = vmatpush2.msra.mxu0 %v96
    %172 = vmatprep.subr.mxu0 %v95
    %173 = vmatpush2.msra.mxu0 %v94
    %174 = vmatprep.subr.mxu0 %v93
    %175 = vmatpush2.msra.mxu0 %v92
    %176 = vmatprep.subr.mxu0 %v91
    %177 = vmatpush2.msra.mxu0 %v90
    %178 = vmatprep.subr.mxu0 %v89
    %179 = vmatpush2.msra.mxu0 %v88
    %180 = vmatprep.subr.mxu0 %v87
    %181 = vmatpush2.msra.mxu0 %v86
    %182 = vmatprep.mubr.f32.mxu0 %v53
    %183 = vmatmul.mubr.f32.gmra.mxu0 %v52
    %v184 = vpop.f32.mrf.mxu0
    %v185 = vadd.f32 0.0, %v184
    %v186 = vpop.f32.mrf.mxu0
    %v187 = vadd.f32 0.0, %v186
    %188 = vdwg.mxu0
    %v189 = vld [vmem:[#allocation7] sm:$0xff]
    %vm190 = vcmask 64512
    %v192 = vsel %vm190, %v189, 0
    %194 = vmatprep.subr.mxu0 0.0
    %195 = vmatpush1.msra.mxu0 0.0
    %196 = vmatprep.subr.mxu0 0.0
    %197 = vmatpush1.msra.mxu0 0.0
    %198 = vmatprep.subr.mxu0 0.0
    %199 = vmatpush1.msra.mxu0 0.0
    %200 = vmatprep.subr.mxu0 0.0
    %201 = vmatpush1.msra.mxu0 0.0
    %202 = vmatprep.subr.mxu0 0.0
    %203 = vmatpush1.msra.mxu0 0.0
    %204 = vmatprep.subr.mxu0 0.0
    %205 = vmatpush1.msra.mxu0 0.0
    %206 = vmatprep.subr.mxu0 0.0
    %207 = vmatpush1.msra.mxu0 0.0
    %208 = vmatprep.subr.mxu0 0.0
    %209 = vmatpush1.msra.mxu0 0.0
    %210 = vmatprep.subr.mxu0 0.0
    %211 = vmatpush1.msra.mxu0 0.0
    %212 = vmatprep.subr.mxu0 0.0
    %213 = vmatpush1.msra.mxu0 0.0
    %214 = vmatprep.subr.mxu0 0.0
    %215 = vmatpush1.msra.mxu0 0.0
    %216 = vmatprep.subr.mxu0 0.0
    %217 = vmatpush1.msra.mxu0 0.0
    %218 = vmatprep.subr.mxu0 0.0
    %219 = vmatpush1.msra.mxu0 0.0
    %220 = vmatprep.subr.mxu0 0.0
    %221 = vmatpush1.msra.mxu0 0.0
    %222 = vmatprep.subr.mxu0 0.0
    %223 = vmatpush1.msra.mxu0 0.0
    %224 = vmatprep.subr.mxu0 %v187
    %225 = vmatpush1.msra.mxu0 %v185
    %226 = vmatprep.subr.mxu0 0.0
    %227 = vmatpush2.msra.mxu0 0.0
    %228 = vmatprep.subr.mxu0 0.0
    %229 = vmatpush2.msra.mxu0 0.0
    %230 = vmatprep.subr.mxu0 0.0
    %231 = vmatpush2.msra.mxu0 0.0
    %232 = vmatprep.subr.mxu0 0.0
    %233 = vmatpush2.msra.mxu0 0.0
    %234 = vmatprep.subr.mxu0 0.0
    %235 = vmatpush2.msra.mxu0 0.0
    %236 = vmatprep.subr.mxu0 0.0
    %237 = vmatpush2.msra.mxu0 0.0
    %238 = vmatprep.subr.mxu0 0.0
    %239 = vmatpush2.msra.mxu0 0.0
    %240 = vmatprep.subr.mxu0 0.0
    %241 = vmatpush2.msra.mxu0 0.0
    %242 = vmatprep.subr.mxu0 0.0
    %243 = vmatpush2.msra.mxu0 0.0
    %244 = vmatprep.subr.mxu0 0.0
    %245 = vmatpush2.msra.mxu0 0.0
    %246 = vmatprep.subr.mxu0 0.0
    %247 = vmatpush2.msra.mxu0 0.0
    %248 = vmatprep.subr.mxu0 0.0
    %249 = vmatpush2.msra.mxu0 0.0
    %250 = vmatprep.subr.mxu0 0.0
    %251 = vmatpush2.msra.mxu0 0.0
    %252 = vmatprep.subr.mxu0 0.0
    %253 = vmatpush2.msra.mxu0 0.0
    %254 = vmatprep.subr.mxu0 0.0
    %255 = vmatpush2.msra.mxu0 0.0
    %256 = vmatprep.subr.mxu0 0.0
    %257 = vmatpush2.msra.mxu0 0.0
    %258 = vmatprep.mubr.f32.mxu0 0.0
    %259 = vmatmul.mubr.f32.gmra.mxu0 %v192
    %v260 = vpop.f32.mrf.mxu0
    %v261 = vadd.f32 0.0, %v260
    %v262 = vpop.f32.mrf.mxu0
    %v263 = vadd.f32 0.0, %v262
    %264 = vdwg.mxu0
    %265 = vst [vmem:[#allocation8] sm:$0xff] %v261
    %266 = vst [vmem:[#allocation8 + $0x8] sm:$0xff] %v263
    // Predicated region
    $region26: #{tpu_custom_call.1} parent=1 // pred_check
      _
    $region27: #{tpu_custom_call.1} parent=1 // pred_check_branch
      %268 = sbr.rel (0) target = $region29
    $region28: #{tpu_custom_call.1} parent=1 // pred_region
      %s270 = ssub.s32 256, 256
      %271 = vsyncadd [#allocation4], %s270
      %s273 = sshll.u32 [#allocation8], 4
      %s274 = int_to_ptr.vmem [resolvable:$true] %s273
      %276 = dma.vmem_to_hbm [thread:$0]  %s274, 256, %s3, [#allocation4]
    $region29: #{tpu_custom_call.1} parent=1 // pred_fallthru
      _
    // Predicated region
    $region30: #{tpu_custom_call.1} parent=1 // pred_check
      _
    $region31: #{tpu_custom_call.1} parent=1 // pred_check_branch
      %278 = sbr.rel (0) target = $region33
    $region32: #{tpu_custom_call.1} parent=1 // pred_region
      %279 = dma.done [#allocation4], 256
    $region33: #{tpu_custom_call.1} parent=1 // pred_fallthru
      _
    %280 = vsyncpa [#allocation3], 1
    %281 = vsyncpa [#allocation6], 1
    %282 = vsyncpa [#allocation4], 1

</llo_original>
